<compile_context>
chip_gen: v7x
topology: tpu7x:2x2x1
jax: 0.10.0
libtpu: 0.0.40
codegen_flags: <defaults>
</compile_context>

<pallas_src>
import jax
import jax.numpy as jnp
from jax.experimental import pallas as pl
from jax.experimental.pallas import tpu as pltpu


def _round_up(x, m):
    return ((x + m - 1) // m) * m


def _cdiv(a, b):
    return -(-a // b)


def _lane_alignment():
    # v6e / v7x MXUs are 2x256x256 -> 256-aligned feature dims avoid ragged
    # vmatmul cadence; 128 remains optimal for <= v5e's 128x128 MXUs.
    try:
        kind = jax.devices()[0].device_kind.lower()
    except Exception:
        kind = ""
    for old in ("v2", "v3", "v4", "v5"):
        if old in kind:
            return 128
    return 256


def _vmem_budget_bytes():
    # Generation-aware cap (128 MiB on v5e/v6e, 64 MiB per TC on v7x) with
    # ~20% headroom for compiler-internal scratch.
    try:
        cap = int(pltpu.get_tpu_info().vmem_capacity_bytes)
    except Exception:
        cap = 64 * 1024 * 1024  # conservative fallback (v7x per-TC)
    return int(cap * 0.8)


def egd_kernel(x_ref, w_enc_ref, w_dec_ref, o_ref, acc_ref):
    """One (batch-tile, hidden-tile) step of relu(x @ Wenc) @ Wdec."""
    k = pl.program_id(1)

    @pl.when(k == 0)
    def _init():
        acc_ref[...] = jnp.zeros_like(acc_ref)

    # Deliberate choice: MXU operands in the weight dtype (bf16 on the fast
    # path), accumulation in f32 via preferred_element_type.
    mxu_dtype = w_enc_ref.dtype
    h = jnp.dot(x_ref[...].astype(mxu_dtype), w_enc_ref[...],
                preferred_element_type=jnp.float32)
    h = jnp.maximum(h, 0.0)
    acc_ref[...] += jnp.dot(h.astype(mxu_dtype), w_dec_ref[...],
                            preferred_element_type=jnp.float32)

    @pl.when(k == pl.num_programs(1) - 1)
    def _store():
        o_ref[...] = acc_ref[...].astype(o_ref.dtype)


def prepare_egd_weights(w_enc, w_dec, *, mxu_dtype=jnp.bfloat16,
                        hidden_tile_max=512):
    """Pad / transpose / cast the nn.Linear weights once (hoisted out of the
    per-call path).

    w_enc: (hidden_dim, input_dim)  -- PyTorch nn.Linear(input_dim, hidden)
    w_dec: (input_dim, hidden_dim)  -- PyTorch nn.Linear(hidden, input_dim)
    """
    H, D_in = w_enc.shape
    assert w_dec.shape == (D_in, H)

    lane = _lane_alignment()
    budget = _vmem_budget_bytes()
    w_itemsize = jnp.dtype(mxu_dtype).itemsize

    D_pad = _round_up(D_in, lane)

    # Hidden tile: lane-aligned, capped so both (double-buffered) weight blocks
    # stay within ~half the VMEM budget.
    th = min(_round_up(H, lane), _round_up(hidden_tile_max, lane))
    while th > lane and 2 * 2 * D_pad * th * w_itemsize > budget // 2:
        th -= lane
    H_pad = _round_up(H, th)  # exact multiple of th (extra pad is zeros)

    w_enc_t = jnp.pad(w_enc.T.astype(mxu_dtype),
                      ((0, D_pad - D_in), (0, H_pad - H)))   # (D_pad, H_pad)
    w_dec_t = jnp.pad(w_dec.T.astype(mxu_dtype),
                      ((0, H_pad - H), (0, D_pad - D_in)))   # (H_pad, D_pad)

    return dict(w_enc_t=w_enc_t, w_dec_t=w_dec_t,
                D_in=D_in, H=H, D_pad=D_pad, H_pad=H_pad, th=th)


def egd_forward(x, params, *, batch_tile_max=512):
    """Forward of EGD_init: relu(x @ w_enc.T) @ w_dec.T using prepared weights."""
    B, D_in = x.shape
    assert D_in == params["D_in"]

    dtype = x.dtype
    itemsize = jnp.dtype(dtype).itemsize
    w_itemsize = jnp.dtype(params["w_enc_t"].dtype).itemsize
    sublane = max(8, 32 // itemsize)           # 8 for f32, 16 for bf16

    D_pad, H_pad, th = params["D_pad"], params["H_pad"], params["th"]
    n_h = H_pad // th
    budget = _vmem_budget_bytes()

    # Batch tile: roughly-equal sublane-aligned tiles (minimal tail padding),
    # >= 2 grid steps when the batch allows it (v7x megacore: 2 TCs/chip).
    n_b = max(_cdiv(B, batch_tile_max), 2 if B > 2 * sublane else 1)
    tb = max(_round_up(_cdiv(B, n_b), sublane), sublane)

    def vmem_needed(tb_):
        w_buf = 1 if n_h == 1 else 2           # Buffered(1) when H fits one tile
        return (2 * tb_ * D_pad * itemsize     # x tile (double-buffered)
                + 2 * tb_ * D_pad * itemsize   # out tile (double-buffered)
                + w_buf * 2 * D_pad * th * w_itemsize   # both weight blocks
                + tb_ * D_pad * 4              # f32 accumulator scratch
                + tb_ * th * 4)                # f32 hidden intermediate

    while tb > sublane and vmem_needed(tb) > budget:
        tb = max(_round_up(tb // 2, sublane), sublane)

    B_pad = _round_up(B, tb)
    x_p = jnp.pad(x, ((0, B_pad - B), (0, D_pad - D_in)))

    n_b_steps = B_pad // tb
    grid = (n_b_steps, n_h)

    # Weight BlockSpecs: stream H-tiles (double-buffered) when n_h > 1; keep a
    # single resident copy (Buffered(1), constant block index) when n_h == 1.
    if n_h == 1:
        w_enc_spec = pl.BlockSpec((D_pad, th), lambda i, k: (0, 0),
                                  pipeline_mode=pl.Buffered(1))
        w_dec_spec = pl.BlockSpec((th, D_pad), lambda i, k: (0, 0),
                                  pipeline_mode=pl.Buffered(1))
        weight_reads = 1
    else:
        w_enc_spec = pl.BlockSpec((D_pad, th), lambda i, k: (0, k))
        w_dec_spec = pl.BlockSpec((th, D_pad), lambda i, k: (k, 0))
        weight_reads = n_b_steps

    cost = pl.CostEstimate(
        flops=4 * B_pad * D_pad * H_pad,
        transcendentals=0,
        bytes_accessed=int(
            x_p.size * itemsize
            + B_pad * D_pad * itemsize
            + weight_reads * (params["w_enc_t"].size + params["w_dec_t"].size)
            * w_itemsize),
    )

    out_p = pl.pallas_call(
        egd_kernel,
        out_shape=jax.ShapeDtypeStruct((B_pad, D_pad), dtype),
        grid_spec=pltpu.PrefetchScalarGridSpec(
            num_scalar_prefetch=0,
            grid=grid,
            in_specs=[
                # x tile: constant across k -> DMA'd once per batch step.
                pl.BlockSpec((tb, D_pad), lambda i, k: (i, 0)),
                w_enc_spec,
                w_dec_spec,
            ],
            # Output block resident across the hidden (reduction) axis.
            out_specs=pl.BlockSpec((tb, D_pad), lambda i, k: (i, 0)),
            scratch_shapes=[pltpu.VMEM((tb, D_pad), jnp.float32)],
        ),
        compiler_params=pltpu.CompilerParams(
            dimension_semantics=("parallel", "arbitrary"),
            vmem_limit_bytes=budget,
        ),
        cost_estimate=cost,
    )(x_p, params["w_enc_t"], params["w_dec_t"])

    # Strip padding back to the caller-visible shape.
    return out_p[:B, :D_in]


if __name__ == "__main__":
    key = jax.random.PRNGKey(0)
    k_x, k_enc, k_dec = jax.random.split(key, 3)

    batch = 8
    input_dim = 32
    hidden_dim = 16

    # nn.Linear(input_dim, hidden) weight has shape (hidden, input_dim);
    # nn.Linear(hidden, input_dim) weight has shape (input_dim, hidden).
    x = jax.random.normal(k_x, (batch, input_dim), dtype=jnp.float32)
    w_enc = jax.random.normal(k_enc, (hidden_dim, input_dim), dtype=jnp.float32) * 0.1
    w_dec = jax.random.normal(k_dec, (input_dim, hidden_dim), dtype=jnp.float32) * 0.1

    # Reference in plain JAX (mirrors the PyTorch forward exactly).
    ref = jnp.maximum(x @ w_enc.T, 0.0) @ w_dec.T

    # Exact path: f32 MXU operands, tight tolerance.
    params_f32 = prepare_egd_weights(w_enc, w_dec, mxu_dtype=jnp.float32)
    out_f32 = jax.block_until_ready(egd_forward(x, params_f32))
    assert out_f32.shape == (batch, input_dim)
    assert jnp.allclose(out_f32, ref, atol=1e-5, rtol=1e-5), "f32 path mismatch"

    # Fast path: bf16 MXU operands, f32 accumulation, loose tolerance.
    params_bf16 = prepare_egd_weights(w_enc, w_dec, mxu_dtype=jnp.bfloat16)
    out_bf16 = jax.block_until_ready(egd_forward(x, params_bf16))
    assert out_bf16.shape == (batch, input_dim)
    assert jnp.allclose(out_bf16, ref, atol=3e-2, rtol=3e-2), "bf16 path mismatch"

    print("KERNEL_OK")
</pallas_src>

<mosaic_0001>
module attributes {stable_mosaic.version = 11 : i64} {
  func.func @egd_kernel(%arg0: i32, %arg1: i32, %arg2: memref<8x256xf32, #tpu.memory_space<vmem>>, %arg3: memref<256x256xf32, #tpu.memory_space<vmem>>, %arg4: memref<256x256xf32, #tpu.memory_space<vmem>>, %arg5: memref<8x256xf32, #tpu.memory_space<vmem>>, %arg6: memref<8x256xf32, #tpu.memory_space<vmem>>) attributes {dimension_semantics = [#tpu.dimension_semantics<parallel>, #tpu.dimension_semantics<arbitrary>], iteration_bounds = array<i64: 1, 1>, scalar_prefetch = 0 : i64, scratch_operands = 1 : i64, tpu.core_type = #tpu.core_type<tc>, window_params = [{transform_indices = @transform_0, window_bounds = array<i64: 8, 256>}, {pipeline_mode = #tpu.pipeline_mode<synchronous>, transform_indices = @transform_1, window_bounds = array<i64: 256, 256>}, {pipeline_mode = #tpu.pipeline_mode<synchronous>, transform_indices = @transform_2, window_bounds = array<i64: 256, 256>}, {transform_indices = @transform_3, window_bounds = array<i64: 8, 256>}]} {
    %c0_i32 = arith.constant 0 : i32
    %0 = arith.cmpi eq, %arg1, %c0_i32 : i32
    %1 = arith.extui %0 : i1 to i32
    %c0_i32_0 = arith.constant 0 : i32
    %2 = arith.cmpi ne, %1, %c0_i32_0 : i32
    scf.if %2 {
      %cst_14 = arith.constant 0.000000e+00 : f32
      %16 = vector.broadcast %cst_14 : f32 to vector<8x256xf32>
      %c0_15 = arith.constant 0 : index
      %c0_16 = arith.constant 0 : index
      %17 = vector.load %arg6[%c0_15, %c0_16] : memref<8x256xf32, #tpu.memory_space<vmem>>, vector<8x256xf32>
      tpu.vector_store %arg6[%c0_15, %c0_16], %16 {strides = array<i32>} : memref<8x256xf32, #tpu.memory_space<vmem>>, vector<8x256xf32>,
    } else {
    }
    %c0 = arith.constant 0 : index
    %c0_1 = arith.constant 0 : index
    %3 = vector.load %arg2[%c0, %c0_1] : memref<8x256xf32, #tpu.memory_space<vmem>>, vector<8x256xf32>
    %c0_2 = arith.constant 0 : index
    %c0_3 = arith.constant 0 : index
    %4 = vector.load %arg3[%c0_2, %c0_3] : memref<256x256xf32, #tpu.memory_space<vmem>>, vector<256x256xf32>
    %cst = arith.constant dense<0.000000e+00> : vector<8x256xf32>
    %5 = tpu.matmul %3, %4, %cst {dimension_numbers = #tpu.dot_dimension_numbers<[1], [0], [0], [1], [0, 0, 1, 1], [], []>} : vector<8x256xf32>, vector<256x256xf32>, vector<8x256xf32> -> vector<8x256xf32>
    %cst_4 = arith.constant 0.000000e+00 : f32
    %6 = vector.broadcast %cst_4 : f32 to vector<8x256xf32>
    %7 = arith.maximumf %5, %6 : vector<8x256xf32>
    %c0_5 = arith.constant 0 : index
    %c0_6 = arith.constant 0 : index
    %8 = vector.load %arg6[%c0_5, %c0_6] : memref<8x256xf32, #tpu.memory_space<vmem>>, vector<8x256xf32>
    %c0_7 = arith.constant 0 : index
    %c0_8 = arith.constant 0 : index
    %9 = vector.load %arg4[%c0_7, %c0_8] : memref<256x256xf32, #tpu.memory_space<vmem>>, vector<256x256xf32>
    %cst_9 = arith.constant dense<0.000000e+00> : vector<8x256xf32>
    %10 = tpu.matmul %7, %9, %cst_9 {dimension_numbers = #tpu.dot_dimension_numbers<[1], [0], [0], [1], [0, 0, 1, 1], [], []>} : vector<8x256xf32>, vector<256x256xf32>, vector<8x256xf32> -> vector<8x256xf32>
    %11 = arith.addf %8, %10 : vector<8x256xf32>
    %c0_10 = arith.constant 0 : index
    %c0_11 = arith.constant 0 : index
    %12 = vector.load %arg6[%c0_10, %c0_11] : memref<8x256xf32, #tpu.memory_space<vmem>>, vector<8x256xf32>
    tpu.vector_store %arg6[%c0_10, %c0_11], %11 {strides = array<i32>} : memref<8x256xf32, #tpu.memory_space<vmem>>, vector<8x256xf32>,
    %c0_i32_12 = arith.constant 0 : i32
    %13 = arith.cmpi eq, %arg1, %c0_i32_12 : i32
    %14 = arith.extui %13 : i1 to i32
    %c0_i32_13 = arith.constant 0 : i32
    %15 = arith.cmpi ne, %14, %c0_i32_13 : i32
    scf.if %15 {
      %c0_14 = arith.constant 0 : index
      %c0_15 = arith.constant 0 : index
      %16 = vector.load %arg6[%c0_14, %c0_15] : memref<8x256xf32, #tpu.memory_space<vmem>>, vector<8x256xf32>
      %c0_16 = arith.constant 0 : index
      %c0_17 = arith.constant 0 : index
      %17 = vector.load %arg5[%c0_16, %c0_17] : memref<8x256xf32, #tpu.memory_space<vmem>>, vector<8x256xf32>
      tpu.vector_store %arg5[%c0_16, %c0_17], %16 {strides = array<i32>} : memref<8x256xf32, #tpu.memory_space<vmem>>, vector<8x256xf32>,
    } else {
    }
    return
  }
  func.func @transform_0(%arg0: i32, %arg1: i32) -> (i32, i32) {
    %c0_i32 = arith.constant 0 : i32
    %c0_i32_0 = arith.constant 0 : i32
    return %arg0, %c0_i32 : i32, i32
  }
  func.func @transform_1(%arg0: i32, %arg1: i32) -> (i32, i32) {
    %c0_i32 = arith.constant 0 : i32
    %c0_i32_0 = arith.constant 0 : i32
    %c0_i32_1 = arith.constant 0 : i32
    return %c0_i32, %c0_i32_0 : i32, i32
  }
  func.func @transform_2(%arg0: i32, %arg1: i32) -> (i32, i32) {
    %c0_i32 = arith.constant 0 : i32
    %c0_i32_0 = arith.constant 0 : i32
    %c0_i32_1 = arith.constant 0 : i32
    return %c0_i32, %c0_i32_0 : i32, i32
  }
  func.func @transform_3(%arg0: i32, %arg1: i32) -> (i32, i32) {
    %c0_i32 = arith.constant 0 : i32
    %c0_i32_0 = arith.constant 0 : i32
    return %arg0, %c0_i32 : i32, i32
  }
}

</mosaic_0001>

<llo_original>
// kernel: tpu_custom_call.1
$region0: #{tpu_custom_call.1}
  #allocation0 [shape = 'u32[]', space=smem, size = 0x4, offset = 0x4, fixed_abs, tag = 'smem constant byte address 0x4 - core index']
  #allocation1 [shape = 'u32[144,128]{1,0:T(1,128)}', space=vmem, size = 0x12000, scoped, tag = 'internal scratch']
  #allocation2 [shape = 'f32[8,256]{1,0:T(8,128)}', space=vmem, size = 0x2000, scoped, tag = 'scratch operand']
  %s0 = inlined_call_operand.hbm [shape: f32[8,256], index: 0, kind: input, shape index: {}]
  %s1 = inlined_call_operand.hbm [shape: f32[256,256], index: 1, kind: input, shape index: {}]
  %s2 = inlined_call_operand.hbm [shape: f32[256,256], index: 2, kind: input, shape index: {}]
  %s3 = inlined_call_operand.hbm [shape: f32[8,256], index: 3, kind: output, shape index: {}]
  %s4 = sld [smem:[#allocation0]]
  $region42: #{tpu_custom_call.1} parent=0
    _
  %s6 = ssub.s32 1, %s4
  %s7 = scalar_select 0, %s6, %s4
  $region1: #{tpu_custom_call.1} parent=0
    #allocation3 [shape = 'u8[8192]{0}', space=vmem, size = 0x2000, scoped, tag = 'input window, operand 0, single buffered']
    #allocation4 [shape = 's32[1]{0}', space=sflag, size = 0x4, scoped, tag = 'scoped memory for tpu_custom_call.1']
    #allocation5 [shape = 's32[1]{0}', space=sflag, size = 0x4, scoped, tag = 'scoped memory for tpu_custom_call.1']
    #allocation6 [shape = 'u8[262144]{0}', space=vmem, size = 0x40000, scoped, tag = 'input window, operand 1, single buffered']
    #allocation7 [shape = 's32[1]{0}', space=sflag, size = 0x4, scoped, tag = 'scoped memory for tpu_custom_call.1']
    #allocation8 [shape = 'u8[262144]{0}', space=vmem, size = 0x40000, scoped, tag = 'input window, operand 2, single buffered']
    #allocation9 [shape = 'u8[8192]{0}', space=vmem, size = 0x2000, scoped, tag = 'output window, operand 0, single buffered']
    %8 = vsyncpa [#allocation4], 0
    %9 = vsyncpa [#allocation7], 0
    %10 = vsyncpa [#allocation5], 0
    // Predicated region
    $region2: #{tpu_custom_call.1} parent=1 // pred_check
      _
    $region3: #{tpu_custom_call.1} parent=1 // pred_check_branch
      %12 = sbr.rel (0) target = $region5
    $region4: #{tpu_custom_call.1} parent=1 // pred_region
      %s14 = ssub.s32 256, 256
      %15 = vsyncadd [#allocation4], %s14
      %s17 = sshll.u32 [#allocation3], 4
      %s18 = int_to_ptr.vmem [resolvable:$true] %s17
      %20 = dma.hbm_to_vmem [thread:$0]  %s0, 256, %s18, [#allocation4]
    $region5: #{tpu_custom_call.1} parent=1 // pred_fallthru
      _
    // Predicated region
    $region6: #{tpu_custom_call.1} parent=1 // pred_check
      _
    $region7: #{tpu_custom_call.1} parent=1 // pred_check_branch
      %22 = sbr.rel (0) target = $region9
    $region8: #{tpu_custom_call.1} parent=1 // pred_region
      %s24 = ssub.s32 8192, 8192
      %25 = vsyncadd [#allocation7], %s24
      %s26 = sshll.u32 [#allocation6], 4
      %s27 = int_to_ptr.vmem [resolvable:$true] %s26
      %32 = dma.hbm_to_vmem [thread:$0]  %s1, 8192, %s27, [#allocation7], 256, 256, 16
    $region9: #{tpu_custom_call.1} parent=1 // pred_fallthru
      _
    // Predicated region
    $region10: #{tpu_custom_call.1} parent=1 // pred_check
      _
    $region11: #{tpu_custom_call.1} parent=1 // pred_check_branch
      %34 = sbr.rel (0) target = $region13
    $region12: #{tpu_custom_call.1} parent=1 // pred_region
      %s36 = ssub.s32 8192, 8192
      %37 = vsyncadd [#allocation7], %s36
      %s38 = sshll.u32 [#allocation8], 4
      %s39 = int_to_ptr.vmem [resolvable:$true] %s38
      %44 = dma.hbm_to_vmem [thread:$0]  %s2, 8192, %s39, [#allocation7], 256, 256, 16
    $region13: #{tpu_custom_call.1} parent=1 // pred_fallthru
      _
    // Predicated region
    $region14: #{tpu_custom_call.1} parent=1 // pred_check
      _
    $region15: #{tpu_custom_call.1} parent=1 // pred_check_branch
      %46 = sbr.rel (0) target = $region17
    $region16: #{tpu_custom_call.1} parent=1 // pred_region
      %47 = dma.done [#allocation4], 256
    $region17: #{tpu_custom_call.1} parent=1 // pred_fallthru
      _
    // Predicated region
    $region18: #{tpu_custom_call.1} parent=1 // pred_check
      _
    $region19: #{tpu_custom_call.1} parent=1 // pred_check_branch
      %49 = sbr.rel (0) target = $region21
    $region20: #{tpu_custom_call.1} parent=1 // pred_region
      %50 = dma.done [#allocation7], 8192
    $region21: #{tpu_custom_call.1} parent=1 // pred_fallthru
      _
    // Predicated region
    $region22: #{tpu_custom_call.1} parent=1 // pred_check
      _
    $region23: #{tpu_custom_call.1} parent=1 // pred_check_branch
      %52 = sbr.rel (0) target = $region25
    $region24: #{tpu_custom_call.1} parent=1 // pred_region
      %53 = dma.done [#allocation7], 8192
    $region25: #{tpu_custom_call.1} parent=1 // pred_fallthru
      _
    %p54 = scmp.eq.s32.totalorder 0, 0
    // Predicated region
    $region26: #{tpu_custom_call.1} parent=1 // pred_check
      %p55 = pneg %p54
    $region27: #{tpu_custom_call.1} parent=1 // pred_check_branch
      %57 = sbr.rel (%p55) target = $region29
    $region28: #{tpu_custom_call.1} parent=1 // pred_region
      %58 = vst [vmem:[#allocation2] sm:$0xff] 0.0
      %59 = vst [vmem:[#allocation2 + $0x8] sm:$0xff] 0.0
    $region29: #{tpu_custom_call.1} parent=1 // pred_fallthru
      _
    %v60 = vld [vmem:[#allocation3] sm:$0xff]
    %v61 = vld [vmem:[#allocation3 + $0x8] sm:$0xff]
    %v62 = vld [vmem:[#allocation6] sm:$0xff]
    %v63 = vld [vmem:[#allocation6 + $0x8] sm:$0xff]
    %v64 = vld [vmem:[#allocation6 + $0x10] sm:$0xff]
    %v65 = vld [vmem:[#allocation6 + $0x18] sm:$0xff]
    %v66 = vld [vmem:[#allocation6 + $0x20] sm:$0xff]
    %v67 = vld [vmem:[#allocation6 + $0x28] sm:$0xff]
    %v68 = vld [vmem:[#allocation6 + $0x30] sm:$0xff]
    %v69 = vld [vmem:[#allocation6 + $0x38] sm:$0xff]
    %v70 = vld [vmem:[#allocation6 + $0x40] sm:$0xff]
    %v71 = vld [vmem:[#allocation6 + $0x48] sm:$0xff]
    %v72 = vld [vmem:[#allocation6 + $0x50] sm:$0xff]
    %v73 = vld [vmem:[#allocation6 + $0x58] sm:$0xff]
    %v74 = vld [vmem:[#allocation6 + $0x60] sm:$0xff]
    %v75 = vld [vmem:[#allocation6 + $0x68] sm:$0xff]
    %v76 = vld [vmem:[#allocation6 + $0x70] sm:$0xff]
    %v77 = vld [vmem:[#allocation6 + $0x78] sm:$0xff]
    %v78 = vld [vmem:[#allocation6 + $0x80] sm:$0xff]
    %v79 = vld [vmem:[#allocation6 + $0x88] sm:$0xff]
    %v80 = vld [vmem:[#allocation6 + $0x90] sm:$0xff]
    %v81 = vld [vmem:[#allocation6 + $0x98] sm:$0xff]
    %v82 = vld [vmem:[#allocation6 + $0xa0] sm:$0xff]
    %v83 = vld [vmem:[#allocation6 + $0xa8] sm:$0xff]
    %v84 = vld [vmem:[#allocation6 + $0xb0] sm:$0xff]
    %v85 = vld [vmem:[#allocation6 + $0xb8] sm:$0xff]
    %v86 = vld [vmem:[#allocation6 + $0xc0] sm:$0xff]
    %v87 = vld [vmem:[#allocation6 + $0xc8] sm:$0xff]
    %v88 = vld [vmem:[#allocation6 + $0xd0] sm:$0xff]
    %v89 = vld [vmem:[#allocation6 + $0xd8] sm:$0xff]
    %v90 = vld [vmem:[#allocation6 + $0xe0] sm:$0xff]
    %v91 = vld [vmem:[#allocation6 + $0xe8] sm:$0xff]
    %v92 = vld [vmem:[#allocation6 + $0xf0] sm:$0xff]
    %v93 = vld [vmem:[#allocation6 + $0xf8] sm:$0xff]
    %v94 = vld [vmem:[#allocation6 + $0x100] sm:$0xff]
    %v95 = vld [vmem:[#allocation6 + $0x108] sm:$0xff]
    %v96 = vld [vmem:[#allocation6 + $0x110] sm:$0xff]
    %v97 = vld [vmem:[#allocation6 + $0x118] sm:$0xff]
    %v98 = vld [vmem:[#allocation6 + $0x120] sm:$0xff]
    %v99 = vld [vmem:[#allocation6 + $0x128] sm:$0xff]
    %v100 = vld [vmem:[#allocation6 + $0x130] sm:$0xff]
    %v101 = vld [vmem:[#allocation6 + $0x138] sm:$0xff]
    %v102 = vld [vmem:[#allocation6 + $0x140] sm:$0xff]
    %v103 = vld [vmem:[#allocation6 + $0x148] sm:$0xff]
    %v104 = vld [vmem:[#allocation6 + $0x150] sm:$0xff]
    %v105 = vld [vmem:[#allocation6 + $0x158] sm:$0xff]
    %v106 = vld [vmem:[#allocation6 + $0x160] sm:$0xff]
    %v107 = vld [vmem:[#allocation6 + $0x168] sm:$0xff]
    %v108 = vld [vmem:[#allocation6 + $0x170] sm:$0xff]
    %v109 = vld [vmem:[#allocation6 + $0x178] sm:$0xff]
    %v110 = vld [vmem:[#allocation6 + $0x180] sm:$0xff]
    %v111 = vld [vmem:[#allocation6 + $0x188] sm:$0xff]
    %v112 = vld [vmem:[#allocation6 + $0x190] sm:$0xff]
    %v113 = vld [vmem:[#allocation6 + $0x198] sm:$0xff]
    %v114 = vld [vmem:[#allocation6 + $0x1a0] sm:$0xff]
    %v115 = vld [vmem:[#allocation6 + $0x1a8] sm:$0xff]
    %v116 = vld [vmem:[#allocation6 + $0x1b0] sm:$0xff]
    %v117 = vld [vmem:[#allocation6 + $0x1b8] sm:$0xff]
    %v118 = vld [vmem:[#allocation6 + $0x1c0] sm:$0xff]
    %v119 = vld [vmem:[#allocation6 + $0x1c8] sm:$0xff]
    %v120 = vld [vmem:[#allocation6 + $0x1d0] sm:$0xff]
    %v121 = vld [vmem:[#allocation6 + $0x1d8] sm:$0xff]
    %v122 = vld [vmem:[#allocation6 + $0x1e0] sm:$0xff]
    %v123 = vld [vmem:[#allocation6 + $0x1e8] sm:$0xff]
    %v124 = vld [vmem:[#allocation6 + $0x1f0] sm:$0xff]
    %v125 = vld [vmem:[#allocation6 + $0x1f8] sm:$0xff]
    %126 = vmatprep.subr.mxu0 %v63
    %127 = vmatpush1.msra.mxu0 %v62
    %128 = vmatprep.subr.mxu0 %v65
    %129 = vmatpush1.msra.mxu0 %v64
    %130 = vmatprep.subr.mxu0 %v67
    %131 = vmatpush1.msra.mxu0 %v66
    %132 = vmatprep.subr.mxu0 %v69
    %133 = vmatpush1.msra.mxu0 %v68
    %134 = vmatprep.subr.mxu0 %v71
    %135 = vmatpush1.msra.mxu0 %v70
    %136 = vmatprep.subr.mxu0 %v73
    %137 = vmatpush1.msra.mxu0 %v72
    %138 = vmatprep.subr.mxu0 %v75
    %139 = vmatpush1.msra.mxu0 %v74
    %140 = vmatprep.subr.mxu0 %v77
    %141 = vmatpush1.msra.mxu0 %v76
    %142 = vmatprep.subr.mxu0 %v79
    %143 = vmatpush1.msra.mxu0 %v78
    %144 = vmatprep.subr.mxu0 %v81
    %145 = vmatpush1.msra.mxu0 %v80
    %146 = vmatprep.subr.mxu0 %v83
    %147 = vmatpush1.msra.mxu0 %v82
    %148 = vmatprep.subr.mxu0 %v85
    %149 = vmatpush1.msra.mxu0 %v84
    %150 = vmatprep.subr.mxu0 %v87
    %151 = vmatpush1.msra.mxu0 %v86
    %152 = vmatprep.subr.mxu0 %v89
    %153 = vmatpush1.msra.mxu0 %v88
    %154 = vmatprep.subr.mxu0 %v91
    %155 = vmatpush1.msra.mxu0 %v90
    %156 = vmatprep.subr.mxu0 %v93
    %157 = vmatpush1.msra.mxu0 %v92
    %158 = vmatprep.subr.mxu0 %v95
    %159 = vmatpush1.msra.mxu0 %v94
    %160 = vmatprep.subr.mxu0 %v97
    %161 = vmatpush1.msra.mxu0 %v96
    %162 = vmatprep.subr.mxu0 %v99
    %163 = vmatpush1.msra.mxu0 %v98
    %164 = vmatprep.subr.mxu0 %v101
    %165 = vmatpush1.msra.mxu0 %v100
    %166 = vmatprep.subr.mxu0 %v103
    %167 = vmatpush1.msra.mxu0 %v102
    %168 = vmatprep.subr.mxu0 %v105
    %169 = vmatpush1.msra.mxu0 %v104
    %170 = vmatprep.subr.mxu0 %v107
    %171 = vmatpush1.msra.mxu0 %v106
    %172 = vmatprep.subr.mxu0 %v109
    %173 = vmatpush1.msra.mxu0 %v108
    %174 = vmatprep.subr.mxu0 %v111
    %175 = vmatpush1.msra.mxu0 %v110
    %176 = vmatprep.subr.mxu0 %v113
    %177 = vmatpush1.msra.mxu0 %v112
    %178 = vmatprep.subr.mxu0 %v115
    %179 = vmatpush1.msra.mxu0 %v114
    %180 = vmatprep.subr.mxu0 %v117
    %181 = vmatpush1.msra.mxu0 %v116
    %182 = vmatprep.subr.mxu0 %v119
    %183 = vmatpush1.msra.mxu0 %v118
    %184 = vmatprep.subr.mxu0 %v121
    %185 = vmatpush1.msra.mxu0 %v120
    %186 = vmatprep.subr.mxu0 %v123
    %187 = vmatpush1.msra.mxu0 %v122
    %188 = vmatprep.subr.mxu0 %v125
    %189 = vmatpush1.msra.mxu0 %v124
    %190 = vmatprep.mubr.f32.mxu0 %v61
    %191 = vmatmul.mubr.f32.gmra.mrb[0].mxu0 %v60
    %v192 = vpop.f32.mrb[0].mxu0
    %v193 = vadd.f32 0.0, %v192
    %v194 = vpop.f32.mrb[0].mxu0
    %v195 = vadd.f32 0.0, %v194
    %196 = vdwg.mxu0
    %v197 = vmax.f32 %v193, 0.0
    %v198 = vmax.f32 %v195, 0.0
    %v199 = vld [vmem:[#allocation2] sm:$0xff]
    %v200 = vld [vmem:[#allocation2 + $0x8] sm:$0xff]
    %v201 = vld [vmem:[#allocation8] sm:$0xff]
    %v202 = vld [vmem:[#allocation8 + $0x8] sm:$0xff]
    %v203 = vld [vmem:[#allocation8 + $0x10] sm:$0xff]
    %v204 = vld [vmem:[#allocation8 + $0x18] sm:$0xff]
    %v205 = vld [vmem:[#allocation8 + $0x20] sm:$0xff]
    %v206 = vld [vmem:[#allocation8 + $0x28] sm:$0xff]
    %v207 = vld [vmem:[#allocation8 + $0x30] sm:$0xff]
    %v208 = vld [vmem:[#allocation8 + $0x38] sm:$0xff]
    %v209 = vld [vmem:[#allocation8 + $0x40] sm:$0xff]
    %v210 = vld [vmem:[#allocation8 + $0x48] sm:$0xff]
    %v211 = vld [vmem:[#allocation8 + $0x50] sm:$0xff]
    %v212 = vld [vmem:[#allocation8 + $0x58] sm:$0xff]
    %v213 = vld [vmem:[#allocation8 + $0x60] sm:$0xff]
    %v214 = vld [vmem:[#allocation8 + $0x68] sm:$0xff]
    %v215 = vld [vmem:[#allocation8 + $0x70] sm:$0xff]
    %v216 = vld [vmem:[#allocation8 + $0x78] sm:$0xff]
    %v217 = vld [vmem:[#allocation8 + $0x80] sm:$0xff]
    %v218 = vld [vmem:[#allocation8 + $0x88] sm:$0xff]
    %v219 = vld [vmem:[#allocation8 + $0x90] sm:$0xff]
    %v220 = vld [vmem:[#allocation8 + $0x98] sm:$0xff]
    %v221 = vld [vmem:[#allocation8 + $0xa0] sm:$0xff]
    %v222 = vld [vmem:[#allocation8 + $0xa8] sm:$0xff]
    %v223 = vld [vmem:[#allocation8 + $0xb0] sm:$0xff]
    %v224 = vld [vmem:[#allocation8 + $0xb8] sm:$0xff]
    %v225 = vld [vmem:[#allocation8 + $0xc0] sm:$0xff]
    %v226 = vld [vmem:[#allocation8 + $0xc8] sm:$0xff]
    %v227 = vld [vmem:[#allocation8 + $0xd0] sm:$0xff]
    %v228 = vld [vmem:[#allocation8 + $0xd8] sm:$0xff]
    %v229 = vld [vmem:[#allocation8 + $0xe0] sm:$0xff]
    %v230 = vld [vmem:[#allocation8 + $0xe8] sm:$0xff]
    %v231 = vld [vmem:[#allocation8 + $0xf0] sm:$0xff]
    %v232 = vld [vmem:[#allocation8 + $0xf8] sm:$0xff]
    %v233 = vld [vmem:[#allocation8 + $0x100] sm:$0xff]
    %v234 = vld [vmem:[#allocation8 + $0x108] sm:$0xff]
    %v235 = vld [vmem:[#allocation8 + $0x110] sm:$0xff]
    %v236 = vld [vmem:[#allocation8 + $0x118] sm:$0xff]
    %v237 = vld [vmem:[#allocation8 + $0x120] sm:$0xff]
    %v238 = vld [vmem:[#allocation8 + $0x128] sm:$0xff]
    %v239 = vld [vmem:[#allocation8 + $0x130] sm:$0xff]
    %v240 = vld [vmem:[#allocation8 + $0x138] sm:$0xff]
    %v241 = vld [vmem:[#allocation8 + $0x140] sm:$0xff]
    %v242 = vld [vmem:[#allocation8 + $0x148] sm:$0xff]
    %v243 = vld [vmem:[#allocation8 + $0x150] sm:$0xff]
    %v244 = vld [vmem:[#allocation8 + $0x158] sm:$0xff]
    %v245 = vld [vmem:[#allocation8 + $0x160] sm:$0xff]
    %v246 = vld [vmem:[#allocation8 + $0x168] sm:$0xff]
    %v247 = vld [vmem:[#allocation8 + $0x170] sm:$0xff]
    %v248 = vld [vmem:[#allocation8 + $0x178] sm:$0xff]
    %v249 = vld [vmem:[#allocation8 + $0x180] sm:$0xff]
    %v250 = vld [vmem:[#allocation8 + $0x188] sm:$0xff]
    %v251 = vld [vmem:[#allocation8 + $0x190] sm:$0xff]
    %v252 = vld [vmem:[#allocation8 + $0x198] sm:$0xff]
    %v253 = vld [vmem:[#allocation8 + $0x1a0] sm:$0xff]
    %v254 = vld [vmem:[#allocation8 + $0x1a8] sm:$0xff]
    %v255 = vld [vmem:[#allocation8 + $0x1b0] sm:$0xff]
    %v256 = vld [vmem:[#allocation8 + $0x1b8] sm:$0xff]
    %v257 = vld [vmem:[#allocation8 + $0x1c0] sm:$0xff]
    %v258 = vld [vmem:[#allocation8 + $0x1c8] sm:$0xff]
    %v259 = vld [vmem:[#allocation8 + $0x1d0] sm:$0xff]
    %v260 = vld [vmem:[#allocation8 + $0x1d8] sm:$0xff]
    %v261 = vld [vmem:[#allocation8 + $0x1e0] sm:$0xff]
    %v262 = vld [vmem:[#allocation8 + $0x1e8] sm:$0xff]
    %v263 = vld [vmem:[#allocation8 + $0x1f0] sm:$0xff]
    %v264 = vld [vmem:[#allocation8 + $0x1f8] sm:$0xff]
    %265 = vmatprep.subr.mxu0 %v202
    %266 = vmatpush1.msra.mxu0 %v201
    %267 = vmatprep.subr.mxu0 %v204
    %268 = vmatpush1.msra.mxu0 %v203
    %269 = vmatprep.subr.mxu0 %v206
    %270 = vmatpush1.msra.mxu0 %v205
    %271 = vmatprep.subr.mxu0 %v208
    %272 = vmatpush1.msra.mxu0 %v207
    %273 = vmatprep.subr.mxu0 %v210
    %274 = vmatpush1.msra.mxu0 %v209
    %275 = vmatprep.subr.mxu0 %v212
    %276 = vmatpush1.msra.mxu0 %v211
    %277 = vmatprep.subr.mxu0 %v214
    %278 = vmatpush1.msra.mxu0 %v213
    %279 = vmatprep.subr.mxu0 %v216
    %280 = vmatpush1.msra.mxu0 %v215
    %281 = vmatprep.subr.mxu0 %v218
    %282 = vmatpush1.msra.mxu0 %v217
    %283 = vmatprep.subr.mxu0 %v220
    %284 = vmatpush1.msra.mxu0 %v219
    %285 = vmatprep.subr.mxu0 %v222
    %286 = vmatpush1.msra.mxu0 %v221
    %287 = vmatprep.subr.mxu0 %v224
    %288 = vmatpush1.msra.mxu0 %v223
    %289 = vmatprep.subr.mxu0 %v226
    %290 = vmatpush1.msra.mxu0 %v225
    %291 = vmatprep.subr.mxu0 %v228
    %292 = vmatpush1.msra.mxu0 %v227
    %293 = vmatprep.subr.mxu0 %v230
    %294 = vmatpush1.msra.mxu0 %v229
    %295 = vmatprep.subr.mxu0 %v232
    %296 = vmatpush1.msra.mxu0 %v231
    %297 = vmatprep.subr.mxu0 %v234
    %298 = vmatpush1.msra.mxu0 %v233
    %299 = vmatprep.subr.mxu0 %v236
    %300 = vmatpush1.msra.mxu0 %v235
    %301 = vmatprep.subr.mxu0 %v238
    %302 = vmatpush1.msra.mxu0 %v237
    %303 = vmatprep.subr.mxu0 %v240
    %304 = vmatpush1.msra.mxu0 %v239
    %305 = vmatprep.subr.mxu0 %v242
    %306 = vmatpush1.msra.mxu0 %v241
    %307 = vmatprep.subr.mxu0 %v244
    %308 = vmatpush1.msra.mxu0 %v243
    %309 = vmatprep.subr.mxu0 %v246
    %310 = vmatpush1.msra.mxu0 %v245
    %311 = vmatprep.subr.mxu0 %v248
    %312 = vmatpush1.msra.mxu0 %v247
    %313 = vmatprep.subr.mxu0 %v250
    %314 = vmatpush1.msra.mxu0 %v249
    %315 = vmatprep.subr.mxu0 %v252
    %316 = vmatpush1.msra.mxu0 %v251
    %317 = vmatprep.subr.mxu0 %v254
    %318 = vmatpush1.msra.mxu0 %v253
    %319 = vmatprep.subr.mxu0 %v256
    %320 = vmatpush1.msra.mxu0 %v255
    %321 = vmatprep.subr.mxu0 %v258
    %322 = vmatpush1.msra.mxu0 %v257
    %323 = vmatprep.subr.mxu0 %v260
    %324 = vmatpush1.msra.mxu0 %v259
    %325 = vmatprep.subr.mxu0 %v262
    %326 = vmatpush1.msra.mxu0 %v261
    %327 = vmatprep.subr.mxu0 %v264
    %328 = vmatpush1.msra.mxu0 %v263
    %329 = vmatprep.mubr.f32.mxu0 %v198
    %330 = vmatmul.mubr.f32.gmra.mrb[0].mxu0 %v197
    %v331 = vpop.f32.mrb[0].mxu0
    %v332 = vadd.f32 0.0, %v331
    %v333 = vpop.f32.mrb[0].mxu0
    %v334 = vadd.f32 0.0, %v333
    %335 = vdwg.mxu0
    %v336 = vadd.f32 %v199, %v332
    %v337 = vadd.f32 %v200, %v334
    %338 = vst [vmem:[#allocation2] sm:$0xff] %v336
    %339 = vst [vmem:[#allocation2 + $0x8] sm:$0xff] %v337
    // Predicated region
    $region30: #{tpu_custom_call.1} parent=1 // pred_check
      %p340 = pneg %p54
    $region31: #{tpu_custom_call.1} parent=1 // pred_check_branch
      %342 = sbr.rel (%p340) target = $region33
    $region32: #{tpu_custom_call.1} parent=1 // pred_region
      %v343 = vld [vmem:[#allocation2] sm:$0xff]
      %v344 = vld [vmem:[#allocation2 + $0x8] sm:$0xff]
      %345 = vst [vmem:[#allocation9] sm:$0xff] %v343
      %346 = vst [vmem:[#allocation9 + $0x8] sm:$0xff] %v344
    $region33: #{tpu_custom_call.1} parent=1 // pred_fallthru
      _
    // Predicated region
    $region34: #{tpu_custom_call.1} parent=1 // pred_check
      _
    $region35: #{tpu_custom_call.1} parent=1 // pred_check_branch
      %348 = sbr.rel (0) target = $region37
    $region36: #{tpu_custom_call.1} parent=1 // pred_region
      %s350 = ssub.s32 256, 256
      %351 = vsyncadd [#allocation5], %s350
      %s353 = sshll.u32 [#allocation9], 4
      %s354 = int_to_ptr.vmem [resolvable:$true] %s353
      %356 = dma.vmem_to_hbm [thread:$0]  %s354, 256, %s3, [#allocation5]
    $region37: #{tpu_custom_call.1} parent=1 // pred_fallthru
      _
    // Predicated region
    $region38: #{tpu_custom_call.1} parent=1 // pred_check
      _
    $region39: #{tpu_custom_call.1} parent=1 // pred_check_branch
      %358 = sbr.rel (0) target = $region41
    $region40: #{tpu_custom_call.1} parent=1 // pred_region
      %359 = dma.done [#allocation5], 256
    $region41: #{tpu_custom_call.1} parent=1 // pred_fallthru
      _
    %360 = vsyncpa [#allocation4], 1
    %361 = vsyncpa [#allocation7], 1
    %362 = vsyncpa [#allocation5], 1

</llo_original>
